<compile_context>
chip_gen: v6e
topology: v6e:2x2x1
jax: 0.10.0
libtpu: 0.0.40
codegen_flags: <defaults>
</compile_context>

<pallas_src>
import jax
import jax.numpy as jnp
import numpy as np
from jax.experimental import pallas as pl
from jax.experimental.pallas import tpu as pltpu


# ----------------------------------------------------------------------------- #
# Kernel
# ----------------------------------------------------------------------------- #
def classifier_kernel(x_ref, wc_ref, bc_ref, w1_ref, b1_ref, w2_ref, b2_ref,
                      w3_ref, b3_ref, out_ref):
    TB, Cin, S = x_ref.shape                       # (TB, Cin, S) bf16 block

    # ---- 1x1 conv: one MXU matmul with M = TB*S --------------------------------
    # Single fused (TB, Cin, S) -> (TB, S, Cin) transpose on already-fetched VMEM
    # data; merging the leading dims is free.
    x2d = jnp.transpose(x_ref[...], (0, 2, 1)).reshape(TB * S, Cin)       # bf16
    y = jnp.dot(x2d, wc_ref[...], preferred_element_type=jnp.float32)    # (TB*S, Cf) f32

    # ---- per-sample global spatial max (vectorized sublane reduce) -------------
    maxes = jnp.max(y.reshape(TB, S, -1), axis=1)                         # (TB, Cf)

    # ---- bias + zero-padding fold ----------------------------------------------
    # kernel=1x1 with zero padding => every border output equals the bias, so
    #   max over padded map == max(interior_max + bias, bias).
    bc = bc_ref[...]                                                      # (1, Cf)
    m = jnp.maximum(maxes + bc, bc)                                       # (TB, Cf) f32

    # ---- 3-layer MLP on this tile (bf16 matmuls, f32 accumulate) ----------------
    h1 = jnp.maximum(
        jnp.dot(m.astype(jnp.bfloat16), w1_ref[...],
                preferred_element_type=jnp.float32) + b1_ref[...], 0.0)
    h2 = jnp.maximum(
        jnp.dot(h1.astype(jnp.bfloat16), w2_ref[...],
                preferred_element_type=jnp.float32) + b2_ref[...], 0.0)
    out_ref[...] = (jnp.dot(h2.astype(jnp.bfloat16), w3_ref[...],
                            preferred_element_type=jnp.float32) + b3_ref[...])


# ----------------------------------------------------------------------------- #
# Tiling helpers
# ----------------------------------------------------------------------------- #
def _round_up(n, m):
    return ((n + m - 1) // m) * m


def _vmem_estimate(TB, Cin, S, Cf, n_hidden, c_pad):
    """Rough per-step VMEM footprint in bytes (double-buffered blocks)."""
    x_blk = TB * Cin * S * 2 * 2                 # bf16 activation block x2 buffers
    y_f32 = TB * S * Cf * 4                      # conv-output intermediate
    mlp = TB * (Cf + 2 * n_hidden + c_pad) * 4   # MLP intermediates
    wts = (Cin * Cf + Cf * n_hidden + n_hidden * n_hidden + n_hidden * c_pad) * 2 * 2
    out_blk = TB * c_pad * 4 * 2
    return x_blk + y_f32 + mlp + wts + out_blk


def _pick_batch_tile(B, Cin, S, Cf, n_hidden, c_pad, budget=24 * (1 << 20)):
    """Largest multiple-of-8 batch tile under a VMEM budget that is conservative
    for every generation (v7x has only 64 MiB VMEM).  Uses the whole (padded)
    batch when it is small, so tiny batches run in a single grid step."""
    b8 = _round_up(B, 8)
    tb = 8
    while (tb < b8 and tb < 1024
           and _vmem_estimate(2 * tb, Cin, S, Cf, n_hidden, c_pad) <= budget):
        tb *= 2
    tb = min(tb, b8)
    return tb, _round_up(B, tb)


# ----------------------------------------------------------------------------- #
# Wrapper
# ----------------------------------------------------------------------------- #
def classifier_forward(x_nchw, params, n_class):
    wc, bc, w1, b1, w2, b2, w3, b3 = params
    B, Cin, H, W = x_nchw.shape
    S = H * W
    Cf = wc.shape[1]
    n_hidden = w1.shape[1]
    c_pad = w3.shape[1]

    TB, B_pad = _pick_batch_tile(B, Cin, S, Cf, n_hidden, c_pad)
    n_tiles = B_pad // TB

    # NCHW -> (B, Cin, S): pure reshape (no HBM transpose); bf16 halves DMA bytes.
    x = x_nchw.reshape(B, Cin, S).astype(jnp.bfloat16)
    if B_pad != B:
        x = jnp.pad(x, ((0, B_pad - B), (0, 0), (0, 0)))

    def rep(shape):  # resident (grid-invariant) operands
        return pl.BlockSpec(shape, lambda t: (0,) * len(shape))

    est = _vmem_estimate(TB, Cin, S, Cf, n_hidden, c_pad)
    vmem_limit = int(min(48 * (1 << 20), max(32 * (1 << 20), 2 * est)))

    out = pl.pallas_call(
        classifier_kernel,
        out_shape=jax.ShapeDtypeStruct((B_pad, c_pad), jnp.float32),
        grid=(n_tiles,),
        in_specs=[
            pl.BlockSpec((TB, Cin, S), lambda t: (t, 0, 0)),   # activations (NCHW-native)
            rep((Cin, Cf)), rep((1, Cf)),                      # conv weight^T (bf16), conv bias
            rep((Cf, n_hidden)), rep((1, n_hidden)),           # mlp.0
            rep((n_hidden, n_hidden)), rep((1, n_hidden)),     # mlp.2
            rep((n_hidden, c_pad)), rep((1, c_pad)),           # mlp.4 (lane-padded head)
        ],
        out_specs=pl.BlockSpec((TB, c_pad), lambda t: (t, 0)), # lane-dense per-tile rows
        compiler_params=pltpu.CompilerParams(
            dimension_semantics=("parallel",),                 # shard tiles across TCs (v7x)
            vmem_limit_bytes=vmem_limit),
    )(x, wc, bc, w1, b1, w2, b2, w3, b3)
    return out[:B, :n_class]


# ----------------------------------------------------------------------------- #
# Params / reference
# ----------------------------------------------------------------------------- #
def kaiming_uniform(key, out_dim, in_dim):
    # torch.nn.init.kaiming_uniform (a=0): bound = sqrt(6 / fan_in); weight is (out, in).
    bound = float(np.sqrt(6.0 / in_dim))
    return jax.random.uniform(key, (out_dim, in_dim), jnp.float32, -bound, bound)


def init_params(key, n_input, n_filter, n_hidden, n_class, c_pad):
    k_conv, k1, k2, k3 = jax.random.split(key, 4)
    wc_t = kaiming_uniform(k_conv, n_filter, n_input)          # conv weight (Cf, Cin)
    w1_t = kaiming_uniform(k1, n_hidden, n_filter)
    w2_t = kaiming_uniform(k2, n_hidden, n_hidden)
    w3_t = kaiming_uniform(k3, n_class, n_hidden)

    # Kernel layout: transposed (in, out), bf16 for the MXU; biases stay f32.
    wc = wc_t.T.astype(jnp.bfloat16)                           # (Cin, Cf)
    bc = jnp.zeros((1, n_filter), jnp.float32)
    w1 = w1_t.T.astype(jnp.bfloat16)                           # (Cf, H)
    b1 = jnp.zeros((1, n_hidden), jnp.float32)
    w2 = w2_t.T.astype(jnp.bfloat16)                           # (H, H)
    b2 = jnp.zeros((1, n_hidden), jnp.float32)
    w3_full = jnp.zeros((n_hidden, c_pad), jnp.float32).at[:, :n_class].set(w3_t.T)
    w3 = w3_full.astype(jnp.bfloat16)                          # (H, c_pad)
    b3 = jnp.zeros((1, c_pad), jnp.float32)
    return (wc, bc, w1, b1, w2, b2, w3, b3)


def reference_forward(x_nchw, params, n_class):
    # Pure-JAX reference mirroring the kernel math (bf16 matmuls, f32 accumulate).
    # Intentional precision choice: bf16 MXU operands, so it differs from f32
    # PyTorch beyond tight fp32 tolerances.
    wc, bc, w1, b1, w2, b2, w3, b3 = params
    B, Cin, H, W = x_nchw.shape
    x = x_nchw.reshape(B, Cin, H * W).astype(jnp.bfloat16)
    xt = jnp.transpose(x, (0, 2, 1))                                 # (B, S, Cin)
    y = jnp.einsum('bsc,cf->bsf', xt, wc,
                   preferred_element_type=jnp.float32)               # interior conv outputs
    m = jnp.maximum(jnp.max(y, axis=1) + bc, bc)                     # padded border == bias only
    h1 = jnp.maximum(jnp.dot(m.astype(jnp.bfloat16), w1,
                             preferred_element_type=jnp.float32) + b1, 0.0)
    h2 = jnp.maximum(jnp.dot(h1.astype(jnp.bfloat16), w2,
                             preferred_element_type=jnp.float32) + b2, 0.0)
    out = jnp.dot(h2.astype(jnp.bfloat16), w3,
                  preferred_element_type=jnp.float32) + b3
    return out[:, :n_class]


if __name__ == "__main__":
    # Small shapes consistent with the module's structure.
    B, n_input, Hs, Ws = 2, 32, 8, 8
    n_filter, n_hidden, n_class = 128, 128, 29
    c_pad = 128                                    # lane-dense padded class head

    key = jax.random.PRNGKey(0)
    k_x, k_p = jax.random.split(key)
    x = jax.random.normal(k_x, (B, n_input, Hs, Ws), jnp.float32)   # NCHW, as in PyTorch
    params = init_params(k_p, n_input, n_filter, n_hidden, n_class, c_pad)

    out = classifier_forward(x, params, n_class)
    out = jax.block_until_ready(out)

    ref = reference_forward(x, params, n_class)
    np.testing.assert_allclose(np.asarray(out), np.asarray(ref), rtol=1e-2, atol=1e-2)
    assert out.shape == (B, n_class)

    print("KERNEL_OK")
</pallas_src>

<mosaic_0001>
module attributes {stable_mosaic.version = 11 : i64} {
  func.func @classifier_kernel(%arg0: i32, %arg1: memref<8x32x64xbf16, #tpu.memory_space<vmem>>, %arg2: memref<32x128xbf16, #tpu.memory_space<vmem>>, %arg3: memref<1x128xf32, #tpu.memory_space<vmem>>, %arg4: memref<128x128xbf16, #tpu.memory_space<vmem>>, %arg5: memref<1x128xf32, #tpu.memory_space<vmem>>, %arg6: memref<128x128xbf16, #tpu.memory_space<vmem>>, %arg7: memref<1x128xf32, #tpu.memory_space<vmem>>, %arg8: memref<128x128xbf16, #tpu.memory_space<vmem>>, %arg9: memref<1x128xf32, #tpu.memory_space<vmem>>, %arg10: memref<8x128xf32, #tpu.memory_space<vmem>>) attributes {dimension_semantics = [#tpu.dimension_semantics<parallel>], iteration_bounds = array<i64: 1>, scalar_prefetch = 0 : i64, scratch_operands = 0 : i64, tpu.core_type = #tpu.core_type<tc>, window_params = [{transform_indices = @transform_0, window_bounds = array<i64: 8, 32, 64>}, {pipeline_mode = #tpu.pipeline_mode<synchronous>, transform_indices = @transform_1, window_bounds = array<i64: 32, 128>}, {pipeline_mode = #tpu.pipeline_mode<synchronous>, transform_indices = @transform_2, window_bounds = array<i64: 1, 128>}, {pipeline_mode = #tpu.pipeline_mode<synchronous>, transform_indices = @transform_3, window_bounds = array<i64: 128, 128>}, {pipeline_mode = #tpu.pipeline_mode<synchronous>, transform_indices = @transform_4, window_bounds = array<i64: 1, 128>}, {pipeline_mode = #tpu.pipeline_mode<synchronous>, transform_indices = @transform_5, window_bounds = array<i64: 128, 128>}, {pipeline_mode = #tpu.pipeline_mode<synchronous>, transform_indices = @transform_6, window_bounds = array<i64: 1, 128>}, {pipeline_mode = #tpu.pipeline_mode<synchronous>, transform_indices = @transform_7, window_bounds = array<i64: 128, 128>}, {pipeline_mode = #tpu.pipeline_mode<synchronous>, transform_indices = @transform_8, window_bounds = array<i64: 1, 128>}, {transform_indices = @transform_9, window_bounds = array<i64: 8, 128>}]} {
    %c0 = arith.constant 0 : index
    %c0_0 = arith.constant 0 : index
    %c0_1 = arith.constant 0 : index
    %0 = vector.load %arg1[%c0, %c0_0, %c0_1] : memref<8x32x64xbf16, #tpu.memory_space<vmem>>, vector<8x32x64xbf16>
    %1 = tpu.transpose %0, [0, 2, 1] : vector<8x32x64xbf16> -> vector<8x64x32xbf16>
    %2 = vector.shape_cast %1 : vector<8x64x32xbf16> to vector<512x32xbf16>
    %c0_2 = arith.constant 0 : index
    %c0_3 = arith.constant 0 : index
    %3 = vector.load %arg2[%c0_2, %c0_3] : memref<32x128xbf16, #tpu.memory_space<vmem>>, vector<32x128xbf16>
    %cst = arith.constant dense<0.000000e+00> : vector<512x128xf32>
    %4 = tpu.matmul %2, %3, %cst {dimension_numbers = #tpu.dot_dimension_numbers<[1], [0], [0], [1], [0, 0, 1, 1], [], []>} : vector<512x32xbf16>, vector<32x128xbf16>, vector<512x128xf32> -> vector<512x128xf32>
    %5 = vector.shape_cast %4 : vector<512x128xf32> to vector<8x64x128xf32>
    %cst_4 = arith.constant dense<0xFF800000> : vector<8x128xf32>
    %6 = vector.multi_reduction <maximumf>, %5, %cst_4 [1] : vector<8x64x128xf32> to vector<8x128xf32>
    %c0_5 = arith.constant 0 : index
    %c0_6 = arith.constant 0 : index
    %7 = vector.load %arg3[%c0_5, %c0_6] : memref<1x128xf32, #tpu.memory_space<vmem>>, vector<1x128xf32>
    %8 = vector.broadcast %7 : vector<1x128xf32> to vector<8x128xf32>
    %9 = arith.addf %6, %8 : vector<8x128xf32>
    %10 = vector.broadcast %7 : vector<1x128xf32> to vector<8x128xf32>
    %11 = arith.maximumf %9, %10 : vector<8x128xf32>
    %12 = arith.truncf %11 : vector<8x128xf32> to vector<8x128xbf16>
    %c0_7 = arith.constant 0 : index
    %c0_8 = arith.constant 0 : index
    %13 = vector.load %arg4[%c0_7, %c0_8] : memref<128x128xbf16, #tpu.memory_space<vmem>>, vector<128x128xbf16>
    %cst_9 = arith.constant dense<0.000000e+00> : vector<8x128xf32>
    %14 = tpu.matmul %12, %13, %cst_9 {dimension_numbers = #tpu.dot_dimension_numbers<[1], [0], [0], [1], [0, 0, 1, 1], [], []>} : vector<8x128xbf16>, vector<128x128xbf16>, vector<8x128xf32> -> vector<8x128xf32>
    %c0_10 = arith.constant 0 : index
    %c0_11 = arith.constant 0 : index
    %15 = vector.load %arg5[%c0_10, %c0_11] : memref<1x128xf32, #tpu.memory_space<vmem>>, vector<1x128xf32>
    %16 = vector.broadcast %15 : vector<1x128xf32> to vector<8x128xf32>
    %17 = arith.addf %14, %16 : vector<8x128xf32>
    %cst_12 = arith.constant 0.000000e+00 : f32
    %18 = vector.broadcast %cst_12 : f32 to vector<8x128xf32>
    %19 = arith.maximumf %17, %18 : vector<8x128xf32>
    %20 = arith.truncf %19 : vector<8x128xf32> to vector<8x128xbf16>
    %c0_13 = arith.constant 0 : index
    %c0_14 = arith.constant 0 : index
    %21 = vector.load %arg6[%c0_13, %c0_14] : memref<128x128xbf16, #tpu.memory_space<vmem>>, vector<128x128xbf16>
    %cst_15 = arith.constant dense<0.000000e+00> : vector<8x128xf32>
    %22 = tpu.matmul %20, %21, %cst_15 {dimension_numbers = #tpu.dot_dimension_numbers<[1], [0], [0], [1], [0, 0, 1, 1], [], []>} : vector<8x128xbf16>, vector<128x128xbf16>, vector<8x128xf32> -> vector<8x128xf32>
    %c0_16 = arith.constant 0 : index
    %c0_17 = arith.constant 0 : index
    %23 = vector.load %arg7[%c0_16, %c0_17] : memref<1x128xf32, #tpu.memory_space<vmem>>, vector<1x128xf32>
    %24 = vector.broadcast %23 : vector<1x128xf32> to vector<8x128xf32>
    %25 = arith.addf %22, %24 : vector<8x128xf32>
    %cst_18 = arith.constant 0.000000e+00 : f32
    %26 = vector.broadcast %cst_18 : f32 to vector<8x128xf32>
    %27 = arith.maximumf %25, %26 : vector<8x128xf32>
    %28 = arith.truncf %27 : vector<8x128xf32> to vector<8x128xbf16>
    %c0_19 = arith.constant 0 : index
    %c0_20 = arith.constant 0 : index
    %29 = vector.load %arg8[%c0_19, %c0_20] : memref<128x128xbf16, #tpu.memory_space<vmem>>, vector<128x128xbf16>
    %cst_21 = arith.constant dense<0.000000e+00> : vector<8x128xf32>
    %30 = tpu.matmul %28, %29, %cst_21 {dimension_numbers = #tpu.dot_dimension_numbers<[1], [0], [0], [1], [0, 0, 1, 1], [], []>} : vector<8x128xbf16>, vector<128x128xbf16>, vector<8x128xf32> -> vector<8x128xf32>
    %c0_22 = arith.constant 0 : index
    %c0_23 = arith.constant 0 : index
    %31 = vector.load %arg9[%c0_22, %c0_23] : memref<1x128xf32, #tpu.memory_space<vmem>>, vector<1x128xf32>
    %32 = vector.broadcast %31 : vector<1x128xf32> to vector<8x128xf32>
    %33 = arith.addf %30, %32 : vector<8x128xf32>
    %c0_24 = arith.constant 0 : index
    %c0_25 = arith.constant 0 : index
    %34 = vector.load %arg10[%c0_24, %c0_25] : memref<8x128xf32, #tpu.memory_space<vmem>>, vector<8x128xf32>
    tpu.vector_store %arg10[%c0_24, %c0_25], %33 {strides = array<i32>} : memref<8x128xf32, #tpu.memory_space<vmem>>, vector<8x128xf32>,
    return
  }
  func.func @transform_0(%arg0: i32) -> (i32, i32, i32) {
    %c0_i32 = arith.constant 0 : i32
    %c0_i32_0 = arith.constant 0 : i32
    %c0_i32_1 = arith.constant 0 : i32
    return %arg0, %c0_i32, %c0_i32_0 : i32, i32, i32
  }
  func.func @transform_1(%arg0: i32) -> (i32, i32) {
    %c0_i32 = arith.constant 0 : i32
    %c0_i32_0 = arith.constant 0 : i32
    %c0_i32_1 = arith.constant 0 : i32
    return %c0_i32, %c0_i32_0 : i32, i32
  }
  func.func @transform_2(%arg0: i32) -> (i32, i32) {
    %c0_i32 = arith.constant 0 : i32
    %c0_i32_0 = arith.constant 0 : i32
    %c0_i32_1 = arith.constant 0 : i32
    return %c0_i32, %c0_i32_0 : i32, i32
  }
  func.func @transform_3(%arg0: i32) -> (i32, i32) {
    %c0_i32 = arith.constant 0 : i32
    %c0_i32_0 = arith.constant 0 : i32
    %c0_i32_1 = arith.constant 0 : i32
    return %c0_i32, %c0_i32_0 : i32, i32
  }
  func.func @transform_4(%arg0: i32) -> (i32, i32) {
    %c0_i32 = arith.constant 0 : i32
    %c0_i32_0 = arith.constant 0 : i32
    %c0_i32_1 = arith.constant 0 : i32
    return %c0_i32, %c0_i32_0 : i32, i32
  }
  func.func @transform_5(%arg0: i32) -> (i32, i32) {
    %c0_i32 = arith.constant 0 : i32
    %c0_i32_0 = arith.constant 0 : i32
    %c0_i32_1 = arith.constant 0 : i32
    return %c0_i32, %c0_i32_0 : i32, i32
  }
  func.func @transform_6(%arg0: i32) -> (i32, i32) {
    %c0_i32 = arith.constant 0 : i32
    %c0_i32_0 = arith.constant 0 : i32
    %c0_i32_1 = arith.constant 0 : i32
    return %c0_i32, %c0_i32_0 : i32, i32
  }
  func.func @transform_7(%arg0: i32) -> (i32, i32) {
    %c0_i32 = arith.constant 0 : i32
    %c0_i32_0 = arith.constant 0 : i32
    %c0_i32_1 = arith.constant 0 : i32
    return %c0_i32, %c0_i32_0 : i32, i32
  }
  func.func @transform_8(%arg0: i32) -> (i32, i32) {
    %c0_i32 = arith.constant 0 : i32
    %c0_i32_0 = arith.constant 0 : i32
    %c0_i32_1 = arith.constant 0 : i32
    return %c0_i32, %c0_i32_0 : i32, i32
  }
  func.func @transform_9(%arg0: i32) -> (i32, i32) {
    %c0_i32 = arith.constant 0 : i32
    %c0_i32_0 = arith.constant 0 : i32
    return %arg0, %c0_i32 : i32, i32
  }
}

</mosaic_0001>

<llo_original>
// kernel: tpu_custom_call.1
$region0: #{tpu_custom_call.1}
  #allocation0 [shape = 'u32[]', space=smem, size = 0x4, offset = 0x4, fixed_abs, tag = 'smem constant byte address 0x4 - core index']
  #allocation1 [shape = 'u32[144,128]{1,0:T(1,128)}', space=vmem, size = 0x12000, scoped, tag = 'internal scratch']
  %s0 = inlined_call_operand.hbm [shape: bf16[8,32,64], index: 0, kind: input, shape index: {}]
  %s1 = inlined_call_operand.hbm [shape: bf16[32,128], index: 1, kind: input, shape index: {}]
  %s2 = inlined_call_operand.vmem [shape: f32[1,128], index: 2, kind: input, shape index: {}]
  %s3 = inlined_call_operand.hbm [shape: bf16[128,128], index: 3, kind: input, shape index: {}]
  %s4 = inlined_call_operand.vmem [shape: f32[1,128], index: 4, kind: input, shape index: {}]
  %s5 = inlined_call_operand.hbm [shape: bf16[128,128], index: 5, kind: input, shape index: {}]
  %s6 = inlined_call_operand.vmem [shape: f32[1,128], index: 6, kind: input, shape index: {}]
  %s7 = inlined_call_operand.hbm [shape: bf16[128,128], index: 7, kind: input, shape index: {}]
  %s8 = inlined_call_operand.vmem [shape: f32[1,128], index: 8, kind: input, shape index: {}]
  %s9 = inlined_call_operand.hbm [shape: f32[8,128], index: 9, kind: output, shape index: {}]
  %s10 = sld [smem:[#allocation0]]
  $region66: #{tpu_custom_call.1} parent=0
    _
  %s12 = ssub.s32 1, %s10
  %s13 = scalar_select 0, %s12, %s10
  $region1: #{tpu_custom_call.1} parent=0
    #allocation2 [shape = 'u8[65536]{0}', space=vmem, size = 0x10000, scoped, tag = 'input window, operand 0, single buffered']
    #allocation3 [shape = 's32[1]{0}', space=sflag, size = 0x4, scoped, tag = 'scoped memory for tpu_custom_call.1']
    #allocation4 [shape = 's32[1]{0}', space=sflag, size = 0x4, scoped, tag = 'scoped memory for tpu_custom_call.1']
    #allocation5 [shape = 'u8[8192]{0}', space=vmem, size = 0x2000, scoped, tag = 'input window, operand 1, single buffered']
    #allocation6 [shape = 's32[1]{0}', space=sflag, size = 0x4, scoped, tag = 'scoped memory for tpu_custom_call.1']
    #allocation7 [shape = 'u8[32768]{0}', space=vmem, size = 0x8000, scoped, tag = 'input window, operand 3, single buffered']
    #allocation8 [shape = 'u8[32768]{0}', space=vmem, size = 0x8000, scoped, tag = 'input window, operand 5, single buffered']
    #allocation9 [shape = 's32[1]{0}', space=sflag, size = 0x4, scoped, tag = 'scoped memory for tpu_custom_call.1']
    #allocation10 [shape = 'u8[32768]{0}', space=vmem, size = 0x8000, scoped, tag = 'input window, operand 7, single buffered']
    #allocation11 [shape = 'u8[4096]{0}', space=vmem, size = 0x1000, scoped, tag = 'output window, operand 0, single buffered']
    %14 = vsyncpa [#allocation3], 0
    %15 = vsyncpa [#allocation6], 0
    %16 = vsyncpa [#allocation9], 0
    %17 = vsyncpa [#allocation4], 0
    // Predicated region
    $region2: #{tpu_custom_call.1} parent=1 // pred_check
      _
    $region3: #{tpu_custom_call.1} parent=1 // pred_check_branch
      %19 = sbr.rel (0) target = $region5
    $region4: #{tpu_custom_call.1} parent=1 // pred_region
      %s21 = ssub.s32 2048, 2048
      %22 = vsyncadd [#allocation3], %s21
      %s23 = sshll.u32 [#allocation2], 4
      %s24 = int_to_ptr.vmem [resolvable:$true] %s23
      %29 = dma.hbm_to_vmem [thread:$0]  %s0, 2048, %s24, [#allocation3], 64, 64, 4
    $region5: #{tpu_custom_call.1} parent=1 // pred_fallthru
      _
    // Predicated region
    $region6: #{tpu_custom_call.1} parent=1 // pred_check
      _
    $region7: #{tpu_custom_call.1} parent=1 // pred_check_branch
      %31 = sbr.rel (0) target = $region9
    $region8: #{tpu_custom_call.1} parent=1 // pred_region
      %s33 = ssub.s32 256, 256
      %34 = vsyncadd [#allocation6], %s33
      %s35 = sshll.u32 [#allocation5], 4
      %s36 = int_to_ptr.vmem [resolvable:$true] %s35
      %41 = dma.hbm_to_vmem [thread:$0]  %s1, 256, %s36, [#allocation6], 64, 64, 4
    $region9: #{tpu_custom_call.1} parent=1 // pred_fallthru
      _
    // Predicated region
    $region10: #{tpu_custom_call.1} parent=1 // pred_check
      _
    $region11: #{tpu_custom_call.1} parent=1 // pred_check_branch
      %43 = sbr.rel (0) target = $region13
    $region12: #{tpu_custom_call.1} parent=1 // pred_region
      _
    $region13: #{tpu_custom_call.1} parent=1 // pred_fallthru
      _
    // Predicated region
    $region14: #{tpu_custom_call.1} parent=1 // pred_check
      _
    $region15: #{tpu_custom_call.1} parent=1 // pred_check_branch
      %45 = sbr.rel (0) target = $region17
    $region16: #{tpu_custom_call.1} parent=1 // pred_region
      %s47 = ssub.s32 1024, 1024
      %48 = vsyncadd [#allocation6], %s47
      %s49 = sshll.u32 [#allocation7], 4
      %s50 = int_to_ptr.vmem [resolvable:$true] %s49
      %55 = dma.hbm_to_vmem [thread:$0]  %s3, 1024, %s50, [#allocation6], 64, 64, 4
    $region17: #{tpu_custom_call.1} parent=1 // pred_fallthru
      _
    // Predicated region
    $region18: #{tpu_custom_call.1} parent=1 // pred_check
      _
    $region19: #{tpu_custom_call.1} parent=1 // pred_check_branch
      %57 = sbr.rel (0) target = $region21
    $region20: #{tpu_custom_call.1} parent=1 // pred_region
      _
    $region21: #{tpu_custom_call.1} parent=1 // pred_fallthru
      _
    // Predicated region
    $region22: #{tpu_custom_call.1} parent=1 // pred_check
      _
    $region23: #{tpu_custom_call.1} parent=1 // pred_check_branch
      %59 = sbr.rel (0) target = $region25
    $region24: #{tpu_custom_call.1} parent=1 // pred_region
      %s61 = ssub.s32 1024, 1024
      %62 = vsyncadd [#allocation9], %s61
      %s63 = sshll.u32 [#allocation8], 4
      %s64 = int_to_ptr.vmem [resolvable:$true] %s63
      %69 = dma.hbm_to_vmem [thread:$0]  %s5, 1024, %s64, [#allocation9], 64, 64, 4
    $region25: #{tpu_custom_call.1} parent=1 // pred_fallthru
      _
    // Predicated region
    $region26: #{tpu_custom_call.1} parent=1 // pred_check
      _
    $region27: #{tpu_custom_call.1} parent=1 // pred_check_branch
      %71 = sbr.rel (0) target = $region29
    $region28: #{tpu_custom_call.1} parent=1 // pred_region
      _
    $region29: #{tpu_custom_call.1} parent=1 // pred_fallthru
      _
    // Predicated region
    $region30: #{tpu_custom_call.1} parent=1 // pred_check
      _
    $region31: #{tpu_custom_call.1} parent=1 // pred_check_branch
      %73 = sbr.rel (0) target = $region33
    $region32: #{tpu_custom_call.1} parent=1 // pred_region
      %s75 = ssub.s32 1024, 1024
      %76 = vsyncadd [#allocation9], %s75
      %s77 = sshll.u32 [#allocation10], 4
      %s78 = int_to_ptr.vmem [resolvable:$true] %s77
      %83 = dma.hbm_to_vmem [thread:$0]  %s7, 1024, %s78, [#allocation9], 64, 64, 4
    $region33: #{tpu_custom_call.1} parent=1 // pred_fallthru
      _
    // Predicated region
    $region34: #{tpu_custom_call.1} parent=1 // pred_check
      _
    $region35: #{tpu_custom_call.1} parent=1 // pred_check_branch
      %85 = sbr.rel (0) target = $region37
    $region36: #{tpu_custom_call.1} parent=1 // pred_region
      _
    $region37: #{tpu_custom_call.1} parent=1 // pred_fallthru
      _
    // Predicated region
    $region38: #{tpu_custom_call.1} parent=1 // pred_check
      _
    $region39: #{tpu_custom_call.1} parent=1 // pred_check_branch
      %87 = sbr.rel (0) target = $region41
    $region40: #{tpu_custom_call.1} parent=1 // pred_region
      %88 = dma.done [#allocation3], 2048
    $region41: #{tpu_custom_call.1} parent=1 // pred_fallthru
      _
    // Predicated region
    $region42: #{tpu_custom_call.1} parent=1 // pred_check
      _
    $region43: #{tpu_custom_call.1} parent=1 // pred_check_branch
      %90 = sbr.rel (0) target = $region45
    $region44: #{tpu_custom_call.1} parent=1 // pred_region
      %91 = dma.done [#allocation6], 256
    $region45: #{tpu_custom_call.1} parent=1 // pred_fallthru
      _
    // Predicated region
    $region46: #{tpu_custom_call.1} parent=1 // pred_check
      _
    $region47: #{tpu_custom_call.1} parent=1 // pred_check_branch
      %93 = sbr.rel (0) target = $region49
    $region48: #{tpu_custom_call.1} parent=1 // pred_region
      %94 = dma.done [#allocation6], 1024
    $region49: #{tpu_custom_call.1} parent=1 // pred_fallthru
      _
    // Predicated region
    $region50: #{tpu_custom_call.1} parent=1 // pred_check
      _
    $region51: #{tpu_custom_call.1} parent=1 // pred_check_branch
      %96 = sbr.rel (0) target = $region53
    $region52: #{tpu_custom_call.1} parent=1 // pred_region
      %97 = dma.done [#allocation9], 1024
    $region53: #{tpu_custom_call.1} parent=1 // pred_fallthru
      _
    // Predicated region
    $region54: #{tpu_custom_call.1} parent=1 // pred_check
      _
    $region55: #{tpu_custom_call.1} parent=1 // pred_check_branch
      %99 = sbr.rel (0) target = $region57
    $region56: #{tpu_custom_call.1} parent=1 // pred_region
      %100 = dma.done [#allocation9], 1024
    $region57: #{tpu_custom_call.1} parent=1 // pred_fallthru
      _
    %v102 = vld [vmem:[#allocation2] sm:$0xf]
    %v103 = vld [vmem:[#allocation2 + $0x4] sm:$0xf]
    %v104 = vld [vmem:[#allocation2 + $0x8] sm:$0xf]
    %v105 = vld [vmem:[#allocation2 + $0xc] sm:$0xf]
    %v106 = vld [vmem:[#allocation2 + $0x10] sm:$0xf]
    %v107 = vld [vmem:[#allocation2 + $0x14] sm:$0xf]
    %v108 = vld [vmem:[#allocation2 + $0x18] sm:$0xf]
    %v109 = vld [vmem:[#allocation2 + $0x1c] sm:$0xf]
    %v110 = vld [vmem:[#allocation2 + $0x20] sm:$0xf]
    %v111 = vld [vmem:[#allocation2 + $0x24] sm:$0xf]
    %v112 = vld [vmem:[#allocation2 + $0x28] sm:$0xf]
    %v113 = vld [vmem:[#allocation2 + $0x2c] sm:$0xf]
    %v114 = vld [vmem:[#allocation2 + $0x30] sm:$0xf]
    %v115 = vld [vmem:[#allocation2 + $0x34] sm:$0xf]
    %v116 = vld [vmem:[#allocation2 + $0x38] sm:$0xf]
    %v117 = vld [vmem:[#allocation2 + $0x3c] sm:$0xf]
    %v118 = vld [vmem:[#allocation2 + $0x40] sm:$0xf]
    %v119 = vld [vmem:[#allocation2 + $0x44] sm:$0xf]
    %v120 = vld [vmem:[#allocation2 + $0x48] sm:$0xf]
    %v121 = vld [vmem:[#allocation2 + $0x4c] sm:$0xf]
    %v122 = vld [vmem:[#allocation2 + $0x50] sm:$0xf]
    %v123 = vld [vmem:[#allocation2 + $0x54] sm:$0xf]
    %v124 = vld [vmem:[#allocation2 + $0x58] sm:$0xf]
    %v125 = vld [vmem:[#allocation2 + $0x5c] sm:$0xf]
    %v126 = vld [vmem:[#allocation2 + $0x60] sm:$0xf]
    %v127 = vld [vmem:[#allocation2 + $0x64] sm:$0xf]
    %v128 = vld [vmem:[#allocation2 + $0x68] sm:$0xf]
    %v129 = vld [vmem:[#allocation2 + $0x6c] sm:$0xf]
    %v130 = vld [vmem:[#allocation2 + $0x70] sm:$0xf]
    %v131 = vld [vmem:[#allocation2 + $0x74] sm:$0xf]
    %v132 = vld [vmem:[#allocation2 + $0x78] sm:$0xf]
    %v133 = vld [vmem:[#allocation2 + $0x7c] sm:$0xf]
    %v166 = vunpack.c.l.b16 %v102
    %v167 = vunpack.c.l.b16 %v103
    %v168 = vunpack.c.l.b16 %v104
    %v169 = vunpack.c.l.b16 %v105
    %v170 = vunpack.c.l.b16 %v106
    %v171 = vunpack.c.l.b16 %v107
    %v172 = vunpack.c.l.b16 %v108
    %v173 = vunpack.c.l.b16 %v109
    %v174 = vunpack.c.l.b16 %v110
    %v175 = vunpack.c.l.b16 %v111
    %v176 = vunpack.c.l.b16 %v112
    %v177 = vunpack.c.l.b16 %v113
    %v178 = vunpack.c.l.b16 %v114
    %v179 = vunpack.c.l.b16 %v115
    %v180 = vunpack.c.l.b16 %v116
    %v181 = vunpack.c.l.b16 %v117
    %v182 = vunpack.c.l.b16 %v118
    %v183 = vunpack.c.l.b16 %v119
    %v184 = vunpack.c.l.b16 %v120
    %v185 = vunpack.c.l.b16 %v121
    %v186 = vunpack.c.l.b16 %v122
    %v187 = vunpack.c.l.b16 %v123
    %v188 = vunpack.c.l.b16 %v124
    %v189 = vunpack.c.l.b16 %v125
    %v190 = vunpack.c.l.b16 %v126
    %v191 = vunpack.c.l.b16 %v127
    %v192 = vunpack.c.l.b16 %v128
    %v193 = vunpack.c.l.b16 %v129
    %v194 = vunpack.c.l.b16 %v130
    %v195 = vunpack.c.l.b16 %v131
    %v196 = vunpack.c.l.b16 %v132
    %v197 = vunpack.c.l.b16 %v133
    %v198 = vpack.c.b16 %v167, %v166
    %v199 = vpack.c.b16 %v169, %v168
    %v200 = vpack.c.b16 %v171, %v170
    %v201 = vpack.c.b16 %v173, %v172
    %v202 = vpack.c.b16 %v175, %v174
    %v203 = vpack.c.b16 %v177, %v176
    %v204 = vpack.c.b16 %v179, %v178
    %v205 = vpack.c.b16 %v181, %v180
    %v206 = vpack.c.b16 %v183, %v182
    %v207 = vpack.c.b16 %v185, %v184
    %v208 = vpack.c.b16 %v187, %v186
    %v209 = vpack.c.b16 %v189, %v188
    %v210 = vpack.c.b16 %v191, %v190
    %v211 = vpack.c.b16 %v193, %v192
    %v212 = vpack.c.b16 %v195, %v194
    %v213 = vpack.c.b16 %v197, %v196
    %230 = vxpose.xlu0.c.b16.start [1/8] %v198, 128
    %231 = vxpose.xlu0.c.b16.cont [2/8] %v199, 128
    %232 = vxpose.xlu0.c.b16.cont [3/8] 0, 128
    %233 = vxpose.xlu0.c.b16.cont [4/8] 0, 128
    %234 = vxpose.xlu0.c.b16.cont [5/8] 0, 128
    %235 = vxpose.xlu0.c.b16.cont [6/8] 0, 128
    %236 = vxpose.xlu0.c.b16.cont [7/8] 0, 128
    %237 = vxpose.xlu0.c.b16.end [8/8] 0, 128
    %v238 = vpop.trf.xlu0
    %v239 = vpop.trf.xlu0
    %v240 = vpop.trf.xlu0
    %v241 = vpop.trf.xlu0
    %v242 = vpop.trf.xlu0
    %v243 = vpop.trf.xlu0
    %v244 = vpop.trf.xlu0
    %v245 = vpop.trf.xlu0
    %246 = vxpose.xlu0.c.b16.start [1/8] %v200, 128
    %247 = vxpose.xlu0.c.b16.cont [2/8] %v201, 128
    %248 = vxpose.xlu0.c.b16.cont [3/8] 0, 128
    %249 = vxpose.xlu0.c.b16.cont [4/8] 0, 128
    %250 = vxpose.xlu0.c.b16.cont [5/8] 0, 128
    %251 = vxpose.xlu0.c.b16.cont [6/8] 0, 128
    %252 = vxpose.xlu0.c.b16.cont [7/8] 0, 128
    %253 = vxpose.xlu0.c.b16.end [8/8] 0, 128
    %v254 = vpop.trf.xlu0
    %v255 = vpop.trf.xlu0
    %v256 = vpop.trf.xlu0
    %v257 = vpop.trf.xlu0
    %v258 = vpop.trf.xlu0
    %v259 = vpop.trf.xlu0
    %v260 = vpop.trf.xlu0
    %v261 = vpop.trf.xlu0
    %262 = vxpose.xlu0.c.b16.start [1/8] %v202, 128
    %263 = vxpose.xlu0.c.b16.cont [2/8] %v203, 128
    %264 = vxpose.xlu0.c.b16.cont [3/8] 0, 128
    %265 = vxpose.xlu0.c.b16.cont [4/8] 0, 128
    %266 = vxpose.xlu0.c.b16.cont [5/8] 0, 128
    %267 = vxpose.xlu0.c.b16.cont [6/8] 0, 128
    %268 = vxpose.xlu0.c.b16.cont [7/8] 0, 128
    %269 = vxpose.xlu0.c.b16.end [8/8] 0, 128
    %v270 = vpop.trf.xlu0
    %v271 = vpop.trf.xlu0
    %v272 = vpop.trf.xlu0
    %v273 = vpop.trf.xlu0
    %v274 = vpop.trf.xlu0
    %v275 = vpop.trf.xlu0
    %v276 = vpop.trf.xlu0
    %v277 = vpop.trf.xlu0
    %278 = vxpose.xlu0.c.b16.start [1/8] %v204, 128
    %279 = vxpose.xlu0.c.b16.cont [2/8] %v205, 128
    %280 = vxpose.xlu0.c.b16.cont [3/8] 0, 128
    %281 = vxpose.xlu0.c.b16.cont [4/8] 0, 128
    %282 = vxpose.xlu0.c.b16.cont [5/8] 0, 128
    %283 = vxpose.xlu0.c.b16.cont [6/8] 0, 128
    %284 = vxpose.xlu0.c.b16.cont [7/8] 0, 128
    %285 = vxpose.xlu0.c.b16.end [8/8] 0, 128
    %v286 = vpop.trf.xlu0
    %v287 = vpop.trf.xlu0
    %v288 = vpop.trf.xlu0
    %v289 = vpop.trf.xlu0
    %v290 = vpop.trf.xlu0
    %v291 = vpop.trf.xlu0
    %v292 = vpop.trf.xlu0
    %v293 = vpop.trf.xlu0
    %294 = vxpose.xlu0.c.b16.start [1/8] %v206, 128
    %295 = vxpose.xlu0.c.b16.cont [2/8] %v207, 128
    %296 = vxpose.xlu0.c.b16.cont [3/8] 0, 128
    %297 = vxpose.xlu0.c.b16.cont [4/8] 0, 128
    %298 = vxpose.xlu0.c.b16.cont [5/8] 0, 128
    %299 = vxpose.xlu0.c.b16.cont [6/8] 0, 128
    %300 = vxpose.xlu0.c.b16.cont [7/8] 0, 128
    %301 = vxpose.xlu0.c.b16.end [8/8] 0, 128
    %v302 = vpop.trf.xlu0
    %v303 = vpop.trf.xlu0
    %v304 = vpop.trf.xlu0
    %v305 = vpop.trf.xlu0
    %v306 = vpop.trf.xlu0
    %v307 = vpop.trf.xlu0
    %v308 = vpop.trf.xlu0
    %v309 = vpop.trf.xlu0
    %310 = vxpose.xlu0.c.b16.start [1/8] %v208, 128
    %311 = vxpose.xlu0.c.b16.cont [2/8] %v209, 128
    %312 = vxpose.xlu0.c.b16.cont [3/8] 0, 128
    %313 = vxpose.xlu0.c.b16.cont [4/8] 0, 128
    %314 = vxpose.xlu0.c.b16.cont [5/8] 0, 128
    %315 = vxpose.xlu0.c.b16.cont [6/8] 0, 128
    %316 = vxpose.xlu0.c.b16.cont [7/8] 0, 128
    %317 = vxpose.xlu0.c.b16.end [8/8] 0, 128
    %v318 = vpop.trf.xlu0
    %v319 = vpop.trf.xlu0
    %v320 = vpop.trf.xlu0
    %v321 = vpop.trf.xlu0
    %v322 = vpop.trf.xlu0
    %v323 = vpop.trf.xlu0
    %v324 = vpop.trf.xlu0
    %v325 = vpop.trf.xlu0
    %326 = vxpose.xlu0.c.b16.start [1/8] %v210, 128
    %327 = vxpose.xlu0.c.b16.cont [2/8] %v211, 128
    %328 = vxpose.xlu0.c.b16.cont [3/8] 0, 128
    %329 = vxpose.xlu0.c.b16.cont [4/8] 0, 128
    %330 = vxpose.xlu0.c.b16.cont [5/8] 0, 128
    %331 = vxpose.xlu0.c.b16.cont [6/8] 0, 128
    %332 = vxpose.xlu0.c.b16.cont [7/8] 0, 128
    %333 = vxpose.xlu0.c.b16.end [8/8] 0, 128
    %v334 = vpop.trf.xlu0
    %v335 = vpop.trf.xlu0
    %v336 = vpop.trf.xlu0
    %v337 = vpop.trf.xlu0
    %v338 = vpop.trf.xlu0
    %v339 = vpop.trf.xlu0
    %v340 = vpop.trf.xlu0
    %v341 = vpop.trf.xlu0
    %342 = vxpose.xlu0.c.b16.start [1/8] %v212, 128
    %343 = vxpose.xlu0.c.b16.cont [2/8] %v213, 128
    %344 = vxpose.xlu0.c.b16.cont [3/8] 0, 128
    %345 = vxpose.xlu0.c.b16.cont [4/8] 0, 128
    %346 = vxpose.xlu0.c.b16.cont [5/8] 0, 128
    %347 = vxpose.xlu0.c.b16.cont [6/8] 0, 128
    %348 = vxpose.xlu0.c.b16.cont [7/8] 0, 128
    %349 = vxpose.xlu0.c.b16.end [8/8] 0, 128
    %v350 = vpop.trf.xlu0
    %v351 = vpop.trf.xlu0
    %v352 = vpop.trf.xlu0
    %v353 = vpop.trf.xlu0
    %v354 = vpop.trf.xlu0
    %v355 = vpop.trf.xlu0
    %v356 = vpop.trf.xlu0
    %v357 = vpop.trf.xlu0
    %v358 = vld [vmem:[#allocation5] sm:$0xf]
    %v359 = vld [vmem:[#allocation5 + $0x4] sm:$0xf]
    %v360 = vld [vmem:[#allocation5 + $0x8] sm:$0xf]
    %v361 = vld [vmem:[#allocation5 + $0xc] sm:$0xf]
    %v366 = vunpack.c.l.b16 %v358
    %v367 = vunpack.c.l.b16 %v359
    %v368 = vunpack.c.l.b16 %v360
    %v369 = vunpack.c.l.b16 %v361
    %v370 = vpack.c.b16 %v367, %v366
    %v371 = vpack.c.b16 %v369, %v368
    %vm374 = vcmask 261120
    %v376 = vsel %vm374, %v238, 0
    %v379 = vsel %vm374, %v239, 0
    %v382 = vsel %vm374, %v240, 0
    %v385 = vsel %vm374, %v241, 0
    %v388 = vsel %vm374, %v254, 0
    %v391 = vsel %vm374, %v255, 0
    %v394 = vsel %vm374, %v256, 0
    %v397 = vsel %vm374, %v257, 0
    %v400 = vsel %vm374, %v270, 0
    %v403 = vsel %vm374, %v271, 0
    %v406 = vsel %vm374, %v272, 0
    %v409 = vsel %vm374, %v273, 0
    %v412 = vsel %vm374, %v286, 0
    %v415 = vsel %vm374, %v287, 0
    %v418 = vsel %vm374, %v288, 0
    %v421 = vsel %vm374, %v289, 0
    %v424 = vsel %vm374, %v302, 0
    %v427 = vsel %vm374, %v303, 0
    %v430 = vsel %vm374, %v304, 0
    %v433 = vsel %vm374, %v305, 0
    %v436 = vsel %vm374, %v318, 0
    %v439 = vsel %vm374, %v319, 0
    %v442 = vsel %vm374, %v320, 0
    %v445 = vsel %vm374, %v321, 0
    %v448 = vsel %vm374, %v334, 0
    %v451 = vsel %vm374, %v335, 0
    %v454 = vsel %vm374, %v336, 0
    %v457 = vsel %vm374, %v337, 0
    %v460 = vsel %vm374, %v350, 0
    %v463 = vsel %vm374, %v351, 0
    %v466 = vsel %vm374, %v352, 0
    %v469 = vsel %vm374, %v353, 0
    %471 = vmatprep.subr.bf16.mxu0 0
    %472 = vmatpush1.bf16.msra.mxu0 0
    %473 = vmatprep.subr.bf16.mxu0 0
    %474 = vmatpush1.bf16.msra.mxu0 0
    %475 = vmatprep.subr.bf16.mxu0 0
    %476 = vmatpush1.bf16.msra.mxu0 0
    %477 = vmatprep.subr.bf16.mxu0 0
    %478 = vmatpush1.bf16.msra.mxu0 0
    %479 = vmatprep.subr.bf16.mxu0 0
    %480 = vmatpush1.bf16.msra.mxu0 0
    %481 = vmatprep.subr.bf16.mxu0 0
    %482 = vmatpush1.bf16.msra.mxu0 0
    %483 = vmatprep.subr.bf16.mxu0 0
    %484 = vmatpush1.bf16.msra.mxu0 %v371
    %485 = vmatprep.subr.bf16.mxu0 0
    %486 = vmatpush1.bf16.msra.mxu0 %v370
    %487 = vmatprep.subr.bf16.mxu0 0
    %488 = vmatpush2.bf16.msra.mxu0 0
    %489 = vmatprep.subr.bf16.mxu0 0
    %490 = vmatpush2.bf16.msra.mxu0 0
    %491 = vmatprep.subr.bf16.mxu0 0
    %492 = vmatpush2.bf16.msra.mxu0 0
    %493 = vmatprep.subr.bf16.mxu0 0
    %494 = vmatpush2.bf16.msra.mxu0 0
    %495 = vmatprep.subr.bf16.mxu0 0
    %496 = vmatpush2.bf16.msra.mxu0 0
    %497 = vmatprep.subr.bf16.mxu0 0
    %498 = vmatpush2.bf16.msra.mxu0 0
    %499 = vmatprep.subr.bf16.mxu0 0
    %500 = vmatpush2.bf16.msra.mxu0 0
    %501 = vmatprep.subr.bf16.mxu0 0
    %502 = vmatpush2.bf16.msra.mxu0 0
    %503 = vmatprep.mubr.bf16.mxu0 0
    %504 = vmatmul.mubr.bf16.gmra.mxu0 %v376
    %v505 = vpop.f32.mrf.mxu0
    %v506 = vadd.f32 0.0, %v505
    %v507 = vpop.f32.mrf.mxu0
    %v508 = vpop.f32.mrf.mxu0
    %v509 = vadd.f32 0.0, %v508
    %v510 = vpop.f32.mrf.mxu0
    %511 = vmatprep.mubr.bf16.mxu0 0
    %512 = vmatmul.mubr.bf16.gmra.mxu0 %v379
    %v513 = vpop.f32.mrf.mxu0
    %v514 = vadd.f32 0.0, %v513
    %v515 = vpop.f32.mrf.mxu0
    %v516 = vpop.f32.mrf.mxu0
    %v517 = vadd.f32 0.0, %v516
    %v518 = vpop.f32.mrf.mxu0
    %519 = vmatprep.mubr.bf16.mxu0 0
    %520 = vmatmul.mubr.bf16.gmra.mxu0 %v382
    %v521 = vpop.f32.mrf.mxu0
    %v522 = vadd.f32 0.0, %v521
    %v523 = vpop.f32.mrf.mxu0
    %v524 = vpop.f32.mrf.mxu0
    %v525 = vadd.f32 0.0, %v524
    %v526 = vpop.f32.mrf.mxu0
    %527 = vmatprep.mubr.bf16.mxu0 0
    %528 = vmatmul.mubr.bf16.gmra.mxu0 %v385
    %v529 = vpop.f32.mrf.mxu0
    %v530 = vadd.f32 0.0, %v529
    %v531 = vpop.f32.mrf.mxu0
    %v532 = vpop.f32.mrf.mxu0
    %v533 = vadd.f32 0.0, %v532
    %v534 = vpop.f32.mrf.mxu0
    %535 = vmatprep.mubr.bf16.mxu0 0
    %536 = vmatmul.mubr.bf16.gmra.mxu0 %v388
    %v537 = vpop.f32.mrf.mxu0
    %v538 = vadd.f32 0.0, %v537
    %v539 = vpop.f32.mrf.mxu0
    %v540 = vpop.f32.mrf.mxu0
    %v541 = vadd.f32 0.0, %v540
    %v542 = vpop.f32.mrf.mxu0
    %543 = vmatprep.mubr.bf16.mxu0 0
    %544 = vmatmul.mubr.bf16.gmra.mxu0 %v391
    %v545 = vpop.f32.mrf.mxu0
    %v546 = vadd.f32 0.0, %v545
    %v547 = vpop.f32.mrf.mxu0
    %v548 = vpop.f32.mrf.mxu0
    %v549 = vadd.f32 0.0, %v548
    %v550 = vpop.f32.mrf.mxu0
    %551 = vmatprep.mubr.bf16.mxu0 0
    %552 = vmatmul.mubr.bf16.gmra.mxu0 %v394
    %v553 = vpop.f32.mrf.mxu0
    %v554 = vadd.f32 0.0, %v553
    %v555 = vpop.f32.mrf.mxu0
    %v556 = vpop.f32.mrf.mxu0
    %v557 = vadd.f32 0.0, %v556
    %v558 = vpop.f32.mrf.mxu0
    %559 = vmatprep.mubr.bf16.mxu0 0
    %560 = vmatmul.mubr.bf16.gmra.mxu0 %v397
    %v561 = vpop.f32.mrf.mxu0
    %v562 = vadd.f32 0.0, %v561
    %v563 = vpop.f32.mrf.mxu0
    %v564 = vpop.f32.mrf.mxu0
    %v565 = vadd.f32 0.0, %v564
    %v566 = vpop.f32.mrf.mxu0
    %567 = vmatprep.mubr.bf16.mxu0 0
    %568 = vmatmul.mubr.bf16.gmra.mxu0 %v400
    %v569 = vpop.f32.mrf.mxu0
    %v570 = vadd.f32 0.0, %v569
    %v571 = vpop.f32.mrf.mxu0
    %v572 = vpop.f32.mrf.mxu0
    %v573 = vadd.f32 0.0, %v572
    %v574 = vpop.f32.mrf.mxu0
    %575 = vmatprep.mubr.bf16.mxu0 0
    %576 = vmatmul.mubr.bf16.gmra.mxu0 %v403
    %v577 = vpop.f32.mrf.mxu0
    %v578 = vadd.f32 0.0, %v577
    %v579 = vpop.f32.mrf.mxu0
    %v580 = vpop.f32.mrf.mxu0
    %v581 = vadd.f32 0.0, %v580
    %v582 = vpop.f32.mrf.mxu0
    %583 = vmatprep.mubr.bf16.mxu0 0
    %584 = vmatmul.mubr.bf16.gmra.mxu0 %v406
    %v585 = vpop.f32.mrf.mxu0
    %v586 = vadd.f32 0.0, %v585
    %v587 = vpop.f32.mrf.mxu0
    %v588 = vpop.f32.mrf.mxu0
    %v589 = vadd.f32 0.0, %v588
    %v590 = vpop.f32.mrf.mxu0
    %591 = vmatprep.mubr.bf16.mxu0 0
    %592 = vmatmul.mubr.bf16.gmra.mxu0 %v409
    %v593 = vpop.f32.mrf.mxu0
    %v594 = vadd.f32 0.0, %v593
    %v595 = vpop.f32.mrf.mxu0
    %v596 = vpop.f32.mrf.mxu0
    %v597 = vadd.f32 0.0, %v596
    %v598 = vpop.f32.mrf.mxu0
    %599 = vmatprep.mubr.bf16.mxu0 0
    %600 = vmatmul.mubr.bf16.gmra.mxu0 %v412
    %v601 = vpop.f32.mrf.mxu0
    %v602 = vadd.f32 0.0, %v601
    %v603 = vpop.f32.mrf.mxu0
    %v604 = vpop.f32.mrf.mxu0
    %v605 = vadd.f32 0.0, %v604
    %v606 = vpop.f32.mrf.mxu0
    %607 = vmatprep.mubr.bf16.mxu0 0
    %608 = vmatmul.mubr.bf16.gmra.mxu0 %v415
    %v609 = vpop.f32.mrf.mxu0
    %v610 = vadd.f32 0.0, %v609
    %v611 = vpop.f32.mrf.mxu0
    %v612 = vpop.f32.mrf.mxu0
    %v613 = vadd.f32 0.0, %v612
    %v614 = vpop.f32.mrf.mxu0
    %615 = vmatprep.mubr.bf16.mxu0 0
    %616 = vmatmul.mubr.bf16.gmra.mxu0 %v418
    %v617 = vpop.f32.mrf.mxu0
    %v618 = vadd.f32 0.0, %v617
    %v619 = vpop.f32.mrf.mxu0
    %v620 = vpop.f32.mrf.mxu0
    %v621 = vadd.f32 0.0, %v620
    %v622 = vpop.f32.mrf.mxu0
    %623 = vmatprep.mubr.bf16.mxu0 0
    %624 = vmatmul.mubr.bf16.gmra.mxu0 %v421
    %v625 = vpop.f32.mrf.mxu0
    %v626 = vadd.f32 0.0, %v625
    %v627 = vpop.f32.mrf.mxu0
    %v628 = vpop.f32.mrf.mxu0
    %v629 = vadd.f32 0.0, %v628
    %v630 = vpop.f32.mrf.mxu0
    %631 = vmatprep.mubr.bf16.mxu0 0
    %632 = vmatmul.mubr.bf16.gmra.mxu0 %v424
    %v633 = vpop.f32.mrf.mxu0
    %v634 = vadd.f32 0.0, %v633
    %v635 = vpop.f32.mrf.mxu0
    %v636 = vpop.f32.mrf.mxu0
    %v637 = vadd.f32 0.0, %v636
    %v638 = vpop.f32.mrf.mxu0
    %639 = vmatprep.mubr.bf16.mxu0 0
    %640 = vmatmul.mubr.bf16.gmra.mxu0 %v427
    %v641 = vpop.f32.mrf.mxu0
    %v642 = vadd.f32 0.0, %v641
    %v643 = vpop.f32.mrf.mxu0
    %v644 = vpop.f32.mrf.mxu0
    %v645 = vadd.f32 0.0, %v644
    %v646 = vpop.f32.mrf.mxu0
    %647 = vmatprep.mubr.bf16.mxu0 0
    %648 = vmatmul.mubr.bf16.gmra.mxu0 %v430
    %v649 = vpop.f32.mrf.mxu0
    %v650 = vadd.f32 0.0, %v649
    %v651 = vpop.f32.mrf.mxu0
    %v652 = vpop.f32.mrf.mxu0
    %v653 = vadd.f32 0.0, %v652
    %v654 = vpop.f32.mrf.mxu0
    %655 = vmatprep.mubr.bf16.mxu0 0
    %656 = vmatmul.mubr.bf16.gmra.mxu0 %v433
    %v657 = vpop.f32.mrf.mxu0
    %v658 = vadd.f32 0.0, %v657
    %v659 = vpop.f32.mrf.mxu0
    %v660 = vpop.f32.mrf.mxu0
    %v661 = vadd.f32 0.0, %v660
    %v662 = vpop.f32.mrf.mxu0
    %663 = vmatprep.mubr.bf16.mxu0 0
    %664 = vmatmul.mubr.bf16.gmra.mxu0 %v436
    %v665 = vpop.f32.mrf.mxu0
    %v666 = vadd.f32 0.0, %v665
    %v667 = vpop.f32.mrf.mxu0
    %v668 = vpop.f32.mrf.mxu0
    %v669 = vadd.f32 0.0, %v668
    %v670 = vpop.f32.mrf.mxu0
    %671 = vmatprep.mubr.bf16.mxu0 0
    %672 = vmatmul.mubr.bf16.gmra.mxu0 %v439
    %v673 = vpop.f32.mrf.mxu0
    %v674 = vadd.f32 0.0, %v673
    %v675 = vpop.f32.mrf.mxu0
    %v676 = vpop.f32.mrf.mxu0
    %v677 = vadd.f32 0.0, %v676
    %v678 = vpop.f32.mrf.mxu0
    %679 = vmatprep.mubr.bf16.mxu0 0
    %680 = vmatmul.mubr.bf16.gmra.mxu0 %v442
    %v681 = vpop.f32.mrf.mxu0
    %v682 = vadd.f32 0.0, %v681
    %v683 = vpop.f32.mrf.mxu0
    %v684 = vpop.f32.mrf.mxu0
    %v685 = vadd.f32 0.0, %v684
    %v686 = vpop.f32.mrf.mxu0
    %687 = vmatprep.mubr.bf16.mxu0 0
    %688 = vmatmul.mubr.bf16.gmra.mxu0 %v445
    %v689 = vpop.f32.mrf.mxu0
    %v690 = vadd.f32 0.0, %v689
    %v691 = vpop.f32.mrf.mxu0
    %v692 = vpop.f32.mrf.mxu0
    %v693 = vadd.f32 0.0, %v692
    %v694 = vpop.f32.mrf.mxu0
    %695 = vmatprep.mubr.bf16.mxu0 0
    %696 = vmatmul.mubr.bf16.gmra.mxu0 %v448
    %v697 = vpop.f32.mrf.mxu0
    %v698 = vadd.f32 0.0, %v697
    %v699 = vpop.f32.mrf.mxu0
    %v700 = vpop.f32.mrf.mxu0
    %v701 = vadd.f32 0.0, %v700
    %v702 = vpop.f32.mrf.mxu0
    %703 = vmatprep.mubr.bf16.mxu0 0
    %704 = vmatmul.mubr.bf16.gmra.mxu0 %v451
    %v705 = vpop.f32.mrf.mxu0
    %v706 = vadd.f32 0.0, %v705
    %v707 = vpop.f32.mrf.mxu0
    %v708 = vpop.f32.mrf.mxu0
    %v709 = vadd.f32 0.0, %v708
    %v710 = vpop.f32.mrf.mxu0
    %711 = vmatprep.mubr.bf16.mxu0 0
    %712 = vmatmul.mubr.bf16.gmra.mxu0 %v454
    %v713 = vpop.f32.mrf.mxu0
    %v714 = vadd.f32 0.0, %v713
    %v715 = vpop.f32.mrf.mxu0
    %v716 = vpop.f32.mrf.mxu0
    %v717 = vadd.f32 0.0, %v716
    %v718 = vpop.f32.mrf.mxu0
    %719 = vmatprep.mubr.bf16.mxu0 0
    %720 = vmatmul.mubr.bf16.gmra.mxu0 %v457
    %v721 = vpop.f32.mrf.mxu0
    %v722 = vadd.f32 0.0, %v721
    %v723 = vpop.f32.mrf.mxu0
    %v724 = vpop.f32.mrf.mxu0
    %v725 = vadd.f32 0.0, %v724
    %v726 = vpop.f32.mrf.mxu0
    %727 = vmatprep.mubr.bf16.mxu0 0
    %728 = vmatmul.mubr.bf16.gmra.mxu0 %v460
    %v729 = vpop.f32.mrf.mxu0
    %v730 = vadd.f32 0.0, %v729
    %v731 = vpop.f32.mrf.mxu0
    %v732 = vpop.f32.mrf.mxu0
    %v733 = vadd.f32 0.0, %v732
    %v734 = vpop.f32.mrf.mxu0
    %735 = vmatprep.mubr.bf16.mxu0 0
    %736 = vmatmul.mubr.bf16.gmra.mxu0 %v463
    %v737 = vpop.f32.mrf.mxu0
    %v738 = vadd.f32 0.0, %v737
    %v739 = vpop.f32.mrf.mxu0
    %v740 = vpop.f32.mrf.mxu0
    %v741 = vadd.f32 0.0, %v740
    %v742 = vpop.f32.mrf.mxu0
    %743 = vmatprep.mubr.bf16.mxu0 0
    %744 = vmatmul.mubr.bf16.gmra.mxu0 %v466
    %v745 = vpop.f32.mrf.mxu0
    %v746 = vadd.f32 0.0, %v745
    %v747 = vpop.f32.mrf.mxu0
    %v748 = vpop.f32.mrf.mxu0
    %v749 = vadd.f32 0.0, %v748
    %v750 = vpop.f32.mrf.mxu0
    %751 = vmatprep.mubr.bf16.mxu0 0
    %752 = vmatmul.mubr.bf16.gmra.mxu0 %v469
    %v753 = vpop.f32.mrf.mxu0
    %v754 = vadd.f32 0.0, %v753
    %v755 = vpop.f32.mrf.mxu0
    %v756 = vpop.f32.mrf.mxu0
    %v757 = vadd.f32 0.0, %v756
    %v758 = vpop.f32.mrf.mxu0
    %759 = vdwg.mxu0
    %v760 = vmax.f32 %v506, %v509
    %v761 = vmax.f32 %v760, %v514
    %v762 = vmax.f32 %v761, %v517
    %v763 = vmax.f32 %v762, %v522
    %v764 = vmax.f32 %v763, %v525
    %v765 = vmax.f32 %v764, %v530
    %v766 = vmax.f32 %v765, %v533
    %v767 = vrot.slane %v766, 4
    %v768 = vmax.f32 %v766, %v767
    %v769 = vrot.slane %v768, 2
    %v770 = vmax.f32 %v768, %v769
    %v771 = vrot.slane %v770, 1
    %v772 = vmax.f32 %v770, %v771
    %v773 = vmax.f32 %v538, %v541
    %v774 = vmax.f32 %v773, %v546
    %v775 = vmax.f32 %v774, %v549
    %v776 = vmax.f32 %v775, %v554
    %v777 = vmax.f32 %v776, %v557
    %v778 = vmax.f32 %v777, %v562
    %v779 = vmax.f32 %v778, %v565
    %v780 = vrot.slane %v779, 4
    %v781 = vmax.f32 %v779, %v780
    %v782 = vrot.slane %v781, 2
    %v783 = vmax.f32 %v781, %v782
    %v784 = vrot.slane %v783, 1
    %v785 = vmax.f32 %v783, %v784
    %v786 = vmax.f32 %v570, %v573
    %v787 = vmax.f32 %v786, %v578
    %v788 = vmax.f32 %v787, %v581
    %v789 = vmax.f32 %v788, %v586
    %v790 = vmax.f32 %v789, %v589
    %v791 = vmax.f32 %v790, %v594
    %v792 = vmax.f32 %v791, %v597
    %v793 = vrot.slane %v792, 4
    %v794 = vmax.f32 %v792, %v793
    %v795 = vrot.slane %v794, 2
    %v796 = vmax.f32 %v794, %v795
    %v797 = vrot.slane %v796, 1
    %v798 = vmax.f32 %v796, %v797
    %v799 = vmax.f32 %v602, %v605
    %v800 = vmax.f32 %v799, %v610
    %v801 = vmax.f32 %v800, %v613
    %v802 = vmax.f32 %v801, %v618
    %v803 = vmax.f32 %v802, %v621
    %v804 = vmax.f32 %v803, %v626
    %v805 = vmax.f32 %v804, %v629
    %v806 = vrot.slane %v805, 4
    %v807 = vmax.f32 %v805, %v806
    %v808 = vrot.slane %v807, 2
    %v809 = vmax.f32 %v807, %v808
    %v810 = vrot.slane %v809, 1
    %v811 = vmax.f32 %v809, %v810
    %v812 = vmax.f32 %v634, %v637
    %v813 = vmax.f32 %v812, %v642
    %v814 = vmax.f32 %v813, %v645
    %v815 = vmax.f32 %v814, %v650
    %v816 = vmax.f32 %v815, %v653
    %v817 = vmax.f32 %v816, %v658
    %v818 = vmax.f32 %v817, %v661
    %v819 = vrot.slane %v818, 4
    %v820 = vmax.f32 %v818, %v819
    %v821 = vrot.slane %v820, 2
    %v822 = vmax.f32 %v820, %v821
    %v823 = vrot.slane %v822, 1
    %v824 = vmax.f32 %v822, %v823
    %v825 = vmax.f32 %v666, %v669
    %v826 = vmax.f32 %v825, %v674
    %v827 = vmax.f32 %v826, %v677
    %v828 = vmax.f32 %v827, %v682
    %v829 = vmax.f32 %v828, %v685
    %v830 = vmax.f32 %v829, %v690
    %v831 = vmax.f32 %v830, %v693
    %v832 = vrot.slane %v831, 4
    %v833 = vmax.f32 %v831, %v832
    %v834 = vrot.slane %v833, 2
    %v835 = vmax.f32 %v833, %v834
    %v836 = vrot.slane %v835, 1
    %v837 = vmax.f32 %v835, %v836
    %v838 = vmax.f32 %v698, %v701
    %v839 = vmax.f32 %v838, %v706
    %v840 = vmax.f32 %v839, %v709
    %v841 = vmax.f32 %v840, %v714
    %v842 = vmax.f32 %v841, %v717
    %v843 = vmax.f32 %v842, %v722
    %v844 = vmax.f32 %v843, %v725
    %v845 = vrot.slane %v844, 4
    %v846 = vmax.f32 %v844, %v845
    %v847 = vrot.slane %v846, 2
    %v848 = vmax.f32 %v846, %v847
    %v849 = vrot.slane %v848, 1
    %v850 = vmax.f32 %v848, %v849
    %v851 = vmax.f32 %v730, %v733
    %v852 = vmax.f32 %v851, %v738
    %v853 = vmax.f32 %v852, %v741
    %v854 = vmax.f32 %v853, %v746
    %v855 = vmax.f32 %v854, %v749
    %v856 = vmax.f32 %v855, %v754
    %v857 = vmax.f32 %v856, %v757
    %v858 = vrot.slane %v857, 4
    %v859 = vmax.f32 %v857, %v858
    %v860 = vrot.slane %v859, 2
    %v861 = vmax.f32 %v859, %v860
    %v862 = vrot.slane %v861, 1
    %v863 = vmax.f32 %v861, %v862
    %v864 = vld [vmem:[%s2] sm:$0x1]
    %v866 = vlaneseq
    %v867 = vshrl.u32 %v866, 7
    %v868 = vsub.s32 0, %v867
    %v869 = vrot.slane %v864, %v868
    %v871 = vadd.f32 %v772, %v869
    %v872 = vadd.f32 %v785, %v869
    %v873 = vadd.f32 %v798, %v869
    %v874 = vadd.f32 %v811, %v869
    %v875 = vadd.f32 %v824, %v869
    %v876 = vadd.f32 %v837, %v869
    %v877 = vadd.f32 %v850, %v869
    %v878 = vadd.f32 %v863, %v869
    %v879 = vmax.f32 %v871, %v869
    %v880 = vmax.f32 %v872, %v869
    %v881 = vmax.f32 %v873, %v869
    %v882 = vmax.f32 %v874, %v869
    %v883 = vmax.f32 %v875, %v869
    %v884 = vmax.f32 %v876, %v869
    %v885 = vmax.f32 %v877, %v869
    %v886 = vmax.f32 %v878, %v869
    %v887 = vpack.c.bf16 %v879, %v879
    %v888 = vpack.c.bf16 %v880, %v880
    %v889 = vpack.c.bf16 %v881, %v881
    %v890 = vpack.c.bf16 %v882, %v882
    %v891 = vpack.c.bf16 %v883, %v883
    %v892 = vpack.c.bf16 %v884, %v884
    %v893 = vpack.c.bf16 %v885, %v885
    %v894 = vpack.c.bf16 %v886, %v886
    %v895 = vld [vmem:[#allocation7] sm:$0xf]
    %v896 = vld [vmem:[#allocation7 + $0x4] sm:$0xf]
    %v897 = vld [vmem:[#allocation7 + $0x8] sm:$0xf]
    %v898 = vld [vmem:[#allocation7 + $0xc] sm:$0xf]
    %v899 = vld [vmem:[#allocation7 + $0x10] sm:$0xf]
    %v900 = vld [vmem:[#allocation7 + $0x14] sm:$0xf]
    %v901 = vld [vmem:[#allocation7 + $0x18] sm:$0xf]
    %v902 = vld [vmem:[#allocation7 + $0x1c] sm:$0xf]
    %v903 = vld [vmem:[#allocation7 + $0x20] sm:$0xf]
    %v904 = vld [vmem:[#allocation7 + $0x24] sm:$0xf]
    %v905 = vld [vmem:[#allocation7 + $0x28] sm:$0xf]
    %v906 = vld [vmem:[#allocation7 + $0x2c] sm:$0xf]
    %v907 = vld [vmem:[#allocation7 + $0x30] sm:$0xf]
    %v908 = vld [vmem:[#allocation7 + $0x34] sm:$0xf]
    %v909 = vld [vmem:[#allocation7 + $0x38] sm:$0xf]
    %v910 = vld [vmem:[#allocation7 + $0x3c] sm:$0xf]
    %v911 = vld [vmem:[%s4] sm:$0x1]
    %v913 = vlaneseq
    %v914 = vshrl.u32 %v913, 7
    %v915 = vsub.s32 0, %v914
    %v916 = vrot.slane %v911, %v915
    %v926 = vunpack.c.l.b16 %v887
    %v927 = vunpack.c.l.b16 %v888
    %v928 = vunpack.c.l.b16 %v889
    %v929 = vunpack.c.l.b16 %v890
    %v930 = vunpack.c.l.b16 %v891
    %v931 = vunpack.c.l.b16 %v892
    %v932 = vunpack.c.l.b16 %v893
    %v933 = vunpack.c.l.b16 %v894
    %v934 = vrot.slane %v927, 7
    %vm935 = vcmask 1041409
    %v936 = vsel %vm935, %v934, %v926
    %v937 = vrot.slane %v928, 6
    %vm938 = vcmask 1042434
    %v939 = vsel %vm938, %v937, %v936
    %v940 = vrot.slane %v929, 5
    %vm941 = vcmask 1043459
    %v942 = vsel %vm941, %v940, %v939
    %v943 = vrot.slane %v930, 4
    %vm944 = vcmask 1044484
    %v945 = vsel %vm944, %v943, %v942
    %v946 = vrot.slane %v931, 3
    %vm947 = vcmask 1045509
    %v948 = vsel %vm947, %v946, %v945
    %v949 = vrot.slane %v932, 2
    %vm950 = vcmask 1046534
    %v951 = vsel %vm950, %v949, %v948
    %v952 = vrot.slane %v933, 1
    %vm953 = vcmask 1047559
    %v954 = vsel %vm953, %v952, %v951
    %v955 = vpack.c.b16 %v954, %v954
    %v973 = vunpack.c.l.b16 %v895
    %v974 = vunpack.c.l.b16 %v896
    %v975 = vunpack.c.l.b16 %v897
    %v976 = vunpack.c.l.b16 %v898
    %v977 = vunpack.c.l.b16 %v899
    %v978 = vunpack.c.l.b16 %v900
    %v979 = vunpack.c.l.b16 %v901
    %v980 = vunpack.c.l.b16 %v902
    %v981 = vunpack.c.l.b16 %v903
    %v982 = vunpack.c.l.b16 %v904
    %v983 = vunpack.c.l.b16 %v905
    %v984 = vunpack.c.l.b16 %v906
    %v985 = vunpack.c.l.b16 %v907
    %v986 = vunpack.c.l.b16 %v908
    %v987 = vunpack.c.l.b16 %v909
    %v988 = vunpack.c.l.b16 %v910
    %v989 = vpack.c.b16 %v974, %v973
    %v990 = vpack.c.b16 %v976, %v975
    %v991 = vpack.c.b16 %v978, %v977
    %v992 = vpack.c.b16 %v980, %v979
    %v993 = vpack.c.b16 %v982, %v981
    %v994 = vpack.c.b16 %v984, %v983
    %v995 = vpack.c.b16 %v986, %v985
    %v996 = vpack.c.b16 %v988, %v987
    %1005 = vmatprep.subr.bf16.mxu0 0
    %1006 = vmatpush1.bf16.msra.mxu0 %v996
    %1007 = vmatprep.subr.bf16.mxu0 0
    %1008 = vmatpush1.bf16.msra.mxu0 %v995
    %1009 = vmatprep.subr.bf16.mxu0 0
    %1010 = vmatpush1.bf16.msra.mxu0 %v994
    %1011 = vmatprep.subr.bf16.mxu0 0
    %1012 = vmatpush1.bf16.msra.mxu0 %v993
    %1013 = vmatprep.subr.bf16.mxu0 0
    %1014 = vmatpush1.bf16.msra.mxu0 %v992
    %1015 = vmatprep.subr.bf16.mxu0 0
    %1016 = vmatpush1.bf16.msra.mxu0 %v991
    %1017 = vmatprep.subr.bf16.mxu0 0
    %1018 = vmatpush1.bf16.msra.mxu0 %v990
    %1019 = vmatprep.subr.bf16.mxu0 0
    %1020 = vmatpush1.bf16.msra.mxu0 %v989
    %1021 = vmatprep.subr.bf16.mxu0 0
    %1022 = vmatpush2.bf16.msra.mxu0 0
    %1023 = vmatprep.subr.bf16.mxu0 0
    %1024 = vmatpush2.bf16.msra.mxu0 0
    %1025 = vmatprep.subr.bf16.mxu0 0
    %1026 = vmatpush2.bf16.msra.mxu0 0
    %1027 = vmatprep.subr.bf16.mxu0 0
    %1028 = vmatpush2.bf16.msra.mxu0 0
    %1029 = vmatprep.subr.bf16.mxu0 0
    %1030 = vmatpush2.bf16.msra.mxu0 0
    %1031 = vmatprep.subr.bf16.mxu0 0
    %1032 = vmatpush2.bf16.msra.mxu0 0
    %1033 = vmatprep.subr.bf16.mxu0 0
    %1034 = vmatpush2.bf16.msra.mxu0 0
    %1035 = vmatprep.subr.bf16.mxu0 0
    %1036 = vmatpush2.bf16.msra.mxu0 0
    %1037 = vmatprep.mubr.bf16.mxu0 0
    %1038 = vmatmul.mubr.bf16.gmra.mxu0 %v955
    %v1039 = vpop.f32.mrf.mxu0
    %v1040 = vadd.f32 %v916, %v1039
    %v1041 = vpop.f32.mrf.mxu0
    %v1042 = vpop.f32.mrf.mxu0
    %v1043 = vpop.f32.mrf.mxu0
    %1044 = vdwg.mxu0
    %v1045 = vmax.f32 %v1040, 0.0
    %v1046 = vpack.c.bf16 %v1045, %v1045
    %v1047 = vld [vmem:[#allocation8] sm:$0xf]
    %v1048 = vld [vmem:[#allocation8 + $0x4] sm:$0xf]
    %v1049 = vld [vmem:[#allocation8 + $0x8] sm:$0xf]
    %v1050 = vld [vmem:[#allocation8 + $0xc] sm:$0xf]
    %v1051 = vld [vmem:[#allocation8 + $0x10] sm:$0xf]
    %v1052 = vld [vmem:[#allocation8 + $0x14] sm:$0xf]
    %v1053 = vld [vmem:[#allocation8 + $0x18] sm:$0xf]
    %v1054 = vld [vmem:[#allocation8 + $0x1c] sm:$0xf]
    %v1055 = vld [vmem:[#allocation8 + $0x20] sm:$0xf]
    %v1056 = vld [vmem:[#allocation8 + $0x24] sm:$0xf]
    %v1057 = vld [vmem:[#allocation8 + $0x28] sm:$0xf]
    %v1058 = vld [vmem:[#allocation8 + $0x2c] sm:$0xf]
    %v1059 = vld [vmem:[#allocation8 + $0x30] sm:$0xf]
    %v1060 = vld [vmem:[#allocation8 + $0x34] sm:$0xf]
    %v1061 = vld [vmem:[#allocation8 + $0x38] sm:$0xf]
    %v1062 = vld [vmem:[#allocation8 + $0x3c] sm:$0xf]
    %v1063 = vld [vmem:[%s6] sm:$0x1]
    %v1065 = vlaneseq
    %v1066 = vshrl.u32 %v1065, 7
    %v1067 = vsub.s32 0, %v1066
    %v1068 = vrot.slane %v1063, %v1067
    %v1086 = vunpack.c.l.b16 %v1047
    %v1087 = vunpack.c.l.b16 %v1048
    %v1088 = vunpack.c.l.b16 %v1049
    %v1089 = vunpack.c.l.b16 %v1050
    %v1090 = vunpack.c.l.b16 %v1051
    %v1091 = vunpack.c.l.b16 %v1052
    %v1092 = vunpack.c.l.b16 %v1053
    %v1093 = vunpack.c.l.b16 %v1054
    %v1094 = vunpack.c.l.b16 %v1055
    %v1095 = vunpack.c.l.b16 %v1056
    %v1096 = vunpack.c.l.b16 %v1057
    %v1097 = vunpack.c.l.b16 %v1058
    %v1098 = vunpack.c.l.b16 %v1059
    %v1099 = vunpack.c.l.b16 %v1060
    %v1100 = vunpack.c.l.b16 %v1061
    %v1101 = vunpack.c.l.b16 %v1062
    %v1102 = vpack.c.b16 %v1087, %v1086
    %v1103 = vpack.c.b16 %v1089, %v1088
    %v1104 = vpack.c.b16 %v1091, %v1090
    %v1105 = vpack.c.b16 %v1093, %v1092
    %v1106 = vpack.c.b16 %v1095, %v1094
    %v1107 = vpack.c.b16 %v1097, %v1096
    %v1108 = vpack.c.b16 %v1099, %v1098
    %v1109 = vpack.c.b16 %v1101, %v1100
    %1118 = vmatprep.subr.bf16.mxu0 0
    %1119 = vmatpush1.bf16.msra.mxu0 %v1109
    %1120 = vmatprep.subr.bf16.mxu0 0
    %1121 = vmatpush1.bf16.msra.mxu0 %v1108
    %1122 = vmatprep.subr.bf16.mxu0 0
    %1123 = vmatpush1.bf16.msra.mxu0 %v1107
    %1124 = vmatprep.subr.bf16.mxu0 0
    %1125 = vmatpush1.bf16.msra.mxu0 %v1106
    %1126 = vmatprep.subr.bf16.mxu0 0
    %1127 = vmatpush1.bf16.msra.mxu0 %v1105
    %1128 = vmatprep.subr.bf16.mxu0 0
    %1129 = vmatpush1.bf16.msra.mxu0 %v1104
    %1130 = vmatprep.subr.bf16.mxu0 0
    %1131 = vmatpush1.bf16.msra.mxu0 %v1103
    %1132 = vmatprep.subr.bf16.mxu0 0
    %1133 = vmatpush1.bf16.msra.mxu0 %v1102
    %1134 = vmatprep.subr.bf16.mxu0 0
    %1135 = vmatpush2.bf16.msra.mxu0 0
    %1136 = vmatprep.subr.bf16.mxu0 0
    %1137 = vmatpush2.bf16.msra.mxu0 0
    %1138 = vmatprep.subr.bf16.mxu0 0
    %1139 = vmatpush2.bf16.msra.mxu0 0
    %1140 = vmatprep.subr.bf16.mxu0 0
    %1141 = vmatpush2.bf16.msra.mxu0 0
    %1142 = vmatprep.subr.bf16.mxu0 0
    %1143 = vmatpush2.bf16.msra.mxu0 0
    %1144 = vmatprep.subr.bf16.mxu0 0
    %1145 = vmatpush2.bf16.msra.mxu0 0
    %1146 = vmatprep.subr.bf16.mxu0 0
    %1147 = vmatpush2.bf16.msra.mxu0 0
    %1148 = vmatprep.subr.bf16.mxu0 0
    %1149 = vmatpush2.bf16.msra.mxu0 0
    %1150 = vmatprep.mubr.bf16.mxu0 0
    %1151 = vmatmul.mubr.bf16.gmra.mxu0 %v1046
    %v1152 = vpop.f32.mrf.mxu0
    %v1153 = vadd.f32 %v1068, %v1152
    %v1154 = vpop.f32.mrf.mxu0
    %v1155 = vpop.f32.mrf.mxu0
    %v1156 = vpop.f32.mrf.mxu0
    %1157 = vdwg.mxu0
    %v1158 = vmax.f32 %v1153, 0.0
    %v1159 = vpack.c.bf16 %v1158, %v1158
    %v1160 = vld [vmem:[#allocation10] sm:$0xf]
    %v1161 = vld [vmem:[#allocation10 + $0x4] sm:$0xf]
    %v1162 = vld [vmem:[#allocation10 + $0x8] sm:$0xf]
    %v1163 = vld [vmem:[#allocation10 + $0xc] sm:$0xf]
    %v1164 = vld [vmem:[#allocation10 + $0x10] sm:$0xf]
    %v1165 = vld [vmem:[#allocation10 + $0x14] sm:$0xf]
    %v1166 = vld [vmem:[#allocation10 + $0x18] sm:$0xf]
    %v1167 = vld [vmem:[#allocation10 + $0x1c] sm:$0xf]
    %v1168 = vld [vmem:[#allocation10 + $0x20] sm:$0xf]
    %v1169 = vld [vmem:[#allocation10 + $0x24] sm:$0xf]
    %v1170 = vld [vmem:[#allocation10 + $0x28] sm:$0xf]
    %v1171 = vld [vmem:[#allocation10 + $0x2c] sm:$0xf]
    %v1172 = vld [vmem:[#allocation10 + $0x30] sm:$0xf]
    %v1173 = vld [vmem:[#allocation10 + $0x34] sm:$0xf]
    %v1174 = vld [vmem:[#allocation10 + $0x38] sm:$0xf]
    %v1175 = vld [vmem:[#allocation10 + $0x3c] sm:$0xf]
    %v1176 = vld [vmem:[%s8] sm:$0x1]
    %v1178 = vlaneseq
    %v1179 = vshrl.u32 %v1178, 7
    %v1180 = vsub.s32 0, %v1179
    %v1181 = vrot.slane %v1176, %v1180
    %v1199 = vunpack.c.l.b16 %v1160
    %v1200 = vunpack.c.l.b16 %v1161
    %v1201 = vunpack.c.l.b16 %v1162
    %v1202 = vunpack.c.l.b16 %v1163
    %v1203 = vunpack.c.l.b16 %v1164
    %v1204 = vunpack.c.l.b16 %v1165
    %v1205 = vunpack.c.l.b16 %v1166
    %v1206 = vunpack.c.l.b16 %v1167
    %v1207 = vunpack.c.l.b16 %v1168
    %v1208 = vunpack.c.l.b16 %v1169
    %v1209 = vunpack.c.l.b16 %v1170
    %v1210 = vunpack.c.l.b16 %v1171
    %v1211 = vunpack.c.l.b16 %v1172
    %v1212 = vunpack.c.l.b16 %v1173
    %v1213 = vunpack.c.l.b16 %v1174
    %v1214 = vunpack.c.l.b16 %v1175
    %v1215 = vpack.c.b16 %v1200, %v1199
    %v1216 = vpack.c.b16 %v1202, %v1201
    %v1217 = vpack.c.b16 %v1204, %v1203
    %v1218 = vpack.c.b16 %v1206, %v1205
    %v1219 = vpack.c.b16 %v1208, %v1207
    %v1220 = vpack.c.b16 %v1210, %v1209
    %v1221 = vpack.c.b16 %v1212, %v1211
    %v1222 = vpack.c.b16 %v1214, %v1213
    %1231 = vmatprep.subr.bf16.mxu0 0
    %1232 = vmatpush1.bf16.msra.mxu0 %v1222
    %1233 = vmatprep.subr.bf16.mxu0 0
    %1234 = vmatpush1.bf16.msra.mxu0 %v1221
    %1235 = vmatprep.subr.bf16.mxu0 0
    %1236 = vmatpush1.bf16.msra.mxu0 %v1220
    %1237 = vmatprep.subr.bf16.mxu0 0
    %1238 = vmatpush1.bf16.msra.mxu0 %v1219
    %1239 = vmatprep.subr.bf16.mxu0 0
    %1240 = vmatpush1.bf16.msra.mxu0 %v1218
    %1241 = vmatprep.subr.bf16.mxu0 0
    %1242 = vmatpush1.bf16.msra.mxu0 %v1217
    %1243 = vmatprep.subr.bf16.mxu0 0
    %1244 = vmatpush1.bf16.msra.mxu0 %v1216
    %1245 = vmatprep.subr.bf16.mxu0 0
    %1246 = vmatpush1.bf16.msra.mxu0 %v1215
    %1247 = vmatprep.subr.bf16.mxu0 0
    %1248 = vmatpush2.bf16.msra.mxu0 0
    %1249 = vmatprep.subr.bf16.mxu0 0
    %1250 = vmatpush2.bf16.msra.mxu0 0
    %1251 = vmatprep.subr.bf16.mxu0 0
    %1252 = vmatpush2.bf16.msra.mxu0 0
    %1253 = vmatprep.subr.bf16.mxu0 0
    %1254 = vmatpush2.bf16.msra.mxu0 0
    %1255 = vmatprep.subr.bf16.mxu0 0
    %1256 = vmatpush2.bf16.msra.mxu0 0
    %1257 = vmatprep.subr.bf16.mxu0 0
    %1258 = vmatpush2.bf16.msra.mxu0 0
    %1259 = vmatprep.subr.bf16.mxu0 0
    %1260 = vmatpush2.bf16.msra.mxu0 0
    %1261 = vmatprep.subr.bf16.mxu0 0
    %1262 = vmatpush2.bf16.msra.mxu0 0
    %1263 = vmatprep.mubr.bf16.mxu0 0
    %1264 = vmatmul.mubr.bf16.gmra.mxu0 %v1159
    %v1265 = vpop.f32.mrf.mxu0
    %v1266 = vadd.f32 %v1181, %v1265
    %v1267 = vpop.f32.mrf.mxu0
    %v1268 = vpop.f32.mrf.mxu0
    %v1269 = vpop.f32.mrf.mxu0
    %1270 = vdwg.mxu0
    %1271 = vst [vmem:[#allocation11] sm:$0xff] %v1266
    // Predicated region
    $region58: #{tpu_custom_call.1} parent=1 // pred_check
      _
    $region59: #{tpu_custom_call.1} parent=1 // pred_check_branch
      %1273 = sbr.rel (0) target = $region61
    $region60: #{tpu_custom_call.1} parent=1 // pred_region
      %s1275 = ssub.s32 128, 128
      %1276 = vsyncadd [#allocation4], %s1275
      %s1278 = sshll.u32 [#allocation11], 4
      %s1279 = int_to_ptr.vmem [resolvable:$true] %s1278
      %1281 = dma.vmem_to_hbm [thread:$0]  %s1279, 128, %s9, [#allocation4]
    $region61: #{tpu_custom_call.1} parent=1 // pred_fallthru
      _
    // Predicated region
    $region62: #{tpu_custom_call.1} parent=1 // pred_check
      _
    $region63: #{tpu_custom_call.1} parent=1 // pred_check_branch
      %1283 = sbr.rel (0) target = $region65
    $region64: #{tpu_custom_call.1} parent=1 // pred_region
      %1284 = dma.done [#allocation4], 128
    $region65: #{tpu_custom_call.1} parent=1 // pred_fallthru
      _
    %1285 = vsyncpa [#allocation3], 1
    %1286 = vsyncpa [#allocation6], 1
    %1287 = vsyncpa [#allocation9], 1
    %1288 = vsyncpa [#allocation4], 1

</llo_original>
